<compile_context>
chip_gen: v7x
topology: tpu7x:2x2x1
jax: 0.10.0
libtpu: 0.0.40
codegen_flags: <defaults>
</compile_context>

<pallas_src>
import functools

import jax
import jax.numpy as jnp
from jax import lax
from jax.experimental import pallas as pl
from jax.experimental.pallas import tpu as pltpu

_LANE = 128                 # full lane width -> lane-dense tiles
_MAX_BLOCK_ROWS = 8192      # 8192 * 128 * 4 B = 4 MiB per f32 input block
_VMEM_LIMIT = 48 << 20      # 2 inputs x 2 buffers x 4 MiB + slack; safe on v7x (64 MiB/TC)
_FAST_PATH_NUMEL = 1 << 18  # below this, fused jnp beats kernel launch overhead
_NUM_SPLITS = 2             # leading "parallel" axis (2 TensorCores on v7x)


def _round_up(x, m):
    return ((x + m - 1) // m) * m


def _min_sublane(dtype):
    # Minimum legal sublane tile: 8 for 32-bit, 16 for 16-bit, 32 for 8-bit.
    return max(8, 32 // jnp.dtype(dtype).itemsize)


def _mse_partial_sum_kernel(p_ref, t_ref, o_ref, *, block_rows, valid_rows,
                            blocks_per_split, num_blocks, grid_blocks):
    # p_ref, t_ref: (block_rows, 128) tiles of the flattened inputs.
    # o_ref:        (8, 128) f32 per-core partial-sum block, resident across
    #               the "arbitrary" axis (accumulator pattern).
    c = pl.program_id(0)           # "parallel" axis (one slice per TensorCore)
    i = pl.program_id(1)           # "arbitrary" reduction axis
    g = c * blocks_per_split + i   # global row-block index

    @pl.when(i == 0)
    def _init():
        o_ref[...] = jnp.zeros_like(o_ref)

    def _accumulate(mask_tail):
        d = p_ref[...].astype(jnp.float32) - t_ref[...].astype(jnp.float32)
        sq = d * d
        if mask_tail:
            # Zero out Pallas block-padding rows past the end of the array
            # (only the last real block can be ragged).
            row = g * block_rows + lax.broadcasted_iota(
                jnp.int32, (block_rows, _LANE), 0)
            sq = jnp.where(row < valid_rows, sq, 0.0)
        # Fold the (block_rows, 128) tile into a single (8, 128) vreg using
        # VALU adds only; the cross-lane reduction happens once, in jnp, on
        # the tiny partial-sum output.
        o_ref[...] += sq.reshape(block_rows // 8, 8, _LANE).sum(axis=0)

    ragged_last = (valid_rows % block_rows) != 0   # static python bool
    has_padding_steps = grid_blocks > num_blocks    # static python bool

    if not ragged_last and not has_padding_steps:
        _accumulate(False)                          # common hot path: no masking
    else:
        @pl.when(g == num_blocks - 1)
        def _last():
            _accumulate(ragged_last)

        @pl.when(g < num_blocks - 1)
        def _body():
            _accumulate(False)
        # g >= num_blocks (clamped duplicate steps when num_blocks is odd)
        # contribute nothing.


@jax.jit
def _mse_loss_pallas(prediction, target):
    n = prediction.size                      # static under jit
    p = prediction.reshape(-1)
    t = target.reshape(-1)

    sub = max(_min_sublane(prediction.dtype), _min_sublane(target.dtype))
    rows = pl.cdiv(n, _LANE)

    if rows >= _MAX_BLOCK_ROWS:
        tr = _MAX_BLOCK_ROWS                 # big streaming blocks
    elif rows >= sub:
        tr = (rows // sub) * sub             # floor to alignment; block <= rows
    else:
        tr = sub                             # tiny input: pad up to one tile

    total_rows = max(rows, tr)
    total = total_rows * _LANE
    if total != n:
        # Rare path (numel not a multiple of 128, or fewer rows than one tile):
        # zero-pad both operands; zeros contribute (0-0)^2 = 0 to the sum and
        # the mean still divides by the ORIGINAL n.
        p = jnp.pad(p, (0, total - n))
        t = jnp.pad(t, (0, total - n))
    p2 = p.reshape(total_rows, _LANE)        # lane-dense 2-D slab (no copy when
    t2 = t.reshape(total_rows, _LANE)        # numel is already a multiple of 128)

    nb = pl.cdiv(total_rows, tr)             # number of real row blocks
    nsplit = _NUM_SPLITS if nb >= 2 else 1   # 2-way core split (v7x); neutral else
    nbi = pl.cdiv(nb, nsplit)                # blocks per split
    grid_blocks = nsplit * nbi

    if grid_blocks == nb:
        in_map = lambda c, i: (c * nbi + i, 0)
    else:
        # Odd block count: clamp the duplicated last step onto a valid block
        # (its contribution is gated off inside the kernel).
        last = nb - 1
        in_map = lambda c, i: (jnp.minimum(c * nbi + i, last), 0)

    kernel = functools.partial(
        _mse_partial_sum_kernel,
        block_rows=tr, valid_rows=total_rows,
        blocks_per_split=nbi, num_blocks=nb, grid_blocks=grid_blocks)

    partials = pl.pallas_call(
        kernel,
        out_shape=jax.ShapeDtypeStruct((nsplit * 8, _LANE), jnp.float32),
        grid=(nsplit, nbi),
        in_specs=[pl.BlockSpec((tr, _LANE), in_map),
                  pl.BlockSpec((tr, _LANE), in_map)],
        out_specs=pl.BlockSpec((8, _LANE), lambda c, i: (c, 0)),
        compiler_params=pltpu.CompilerParams(
            dimension_semantics=("parallel", "arbitrary"),
            vmem_limit_bytes=_VMEM_LIMIT),
    )(p2, t2)

    return jnp.sum(partials) / n


@jax.jit
def _mse_loss_small(prediction, target):
    d = prediction.astype(jnp.float32) - target.astype(jnp.float32)
    return jnp.mean(d * d)


def mse_loss(prediction, target):
    """Pallas implementation of MSELoss.forward: mean((prediction - target)^2)."""
    assert prediction.shape == target.shape, (prediction.shape, target.shape)
    if prediction.size < _FAST_PATH_NUMEL:
        # Kernel launch / DMA-setup cost dominates for tiny tensors.
        return _mse_loss_small(prediction, target)
    return _mse_loss_pallas(prediction, target)


def _reference(prediction, target):
    d = prediction.astype(jnp.float32) - target.astype(jnp.float32)
    return jnp.mean(d * d)


if __name__ == "__main__":
    key = jax.random.PRNGKey(0)
    ks = jax.random.split(key, 6)

    # 1) Module-canonical small shape (batch=2, channels=4, 16x16): run the
    #    Pallas kernel path directly, plus the public wrapper (fast path).
    pred = jax.random.normal(ks[0], (2, 4, 16, 16), jnp.float32)
    targ = jax.random.normal(ks[1], (2, 4, 16, 16), jnp.float32)
    want = _reference(pred, targ)
    got_k = jax.block_until_ready(_mse_loss_pallas(pred, targ))
    got_w = jax.block_until_ready(mse_loss(pred, targ))
    assert got_k.shape == ()
    assert jnp.allclose(got_k, want, atol=1e-5, rtol=1e-5), (float(got_k), float(want))
    assert jnp.allclose(got_w, want, atol=1e-5, rtol=1e-5), (float(got_w), float(want))

    # 2) Larger image batch: multi-block grid, 2-way core split (grid=(2, nbi)),
    #    odd block count (clamped duplicate step) and ragged last block masked
    #    in-kernel — all through the public wrapper's Pallas path.
    pred2 = jax.random.normal(ks[2], (5, 4, 360, 360), jnp.float32)
    targ2 = jax.random.normal(ks[3], (5, 4, 360, 360), jnp.float32)
    got2 = jax.block_until_ready(mse_loss(pred2, targ2))
    want2 = _reference(pred2, targ2)
    assert jnp.allclose(got2, want2, atol=1e-4, rtol=1e-4), (float(got2), float(want2))

    # 3) numel not a multiple of 128 with bf16 inputs kept native in HBM
    #    (exercises the zero-pad fallback and the 16-row sublane alignment).
    pred3 = jax.random.normal(ks[4], (3, 5, 7, 11), jnp.float32).astype(jnp.bfloat16)
    targ3 = jax.random.normal(ks[5], (3, 5, 7, 11), jnp.float32).astype(jnp.bfloat16)
    got3 = jax.block_until_ready(_mse_loss_pallas(pred3, targ3))
    want3 = _reference(pred3, targ3)
    assert jnp.allclose(got3, want3, atol=1e-3, rtol=1e-3), (float(got3), float(want3))

    # TODO(synk): MSELoss.backward (2 * diff / numel) and the cached self.diff
    # state are not part of the forward pass and are not implemented here.
    print("KERNEL_OK")
</pallas_src>

<mosaic_0001>
module attributes {stable_mosaic.version = 11 : i64} {
  func.func @_mse_partial_sum_kernel(%arg0: i32, %arg1: i32, %arg2: memref<16x128xf32, #tpu.memory_space<vmem>>, %arg3: memref<16x128xf32, #tpu.memory_space<vmem>>, %arg4: memref<8x128xf32, #tpu.memory_space<vmem>>) attributes {dimension_semantics = [#tpu.dimension_semantics<parallel>, #tpu.dimension_semantics<arbitrary>], iteration_bounds = array<i64: 1, 1>, scalar_prefetch = 0 : i64, scratch_operands = 0 : i64, tpu.core_type = #tpu.core_type<tc>, window_params = [{transform_indices = @transform_0, window_bounds = array<i64: 16, 128>}, {transform_indices = @transform_1, window_bounds = array<i64: 16, 128>}, {transform_indices = @transform_2, window_bounds = array<i64: 8, 128>}]} {
    %c0_i32 = arith.constant 0 : i32
    %0 = arith.cmpi eq, %arg1, %c0_i32 : i32
    %1 = arith.extui %0 : i1 to i32
    %c0_i32_0 = arith.constant 0 : i32
    %2 = arith.cmpi ne, %1, %c0_i32_0 : i32
    scf.if %2 {
      %cst_8 = arith.constant 0.000000e+00 : f32
      %12 = vector.broadcast %cst_8 : f32 to vector<8x128xf32>
      %c0_9 = arith.constant 0 : index
      %c0_10 = arith.constant 0 : index
      %13 = vector.load %arg4[%c0_9, %c0_10] : memref<8x128xf32, #tpu.memory_space<vmem>>, vector<8x128xf32>
      tpu.vector_store %arg4[%c0_9, %c0_10], %12 {strides = array<i32>} : memref<8x128xf32, #tpu.memory_space<vmem>>, vector<8x128xf32>,
    } else {
    }
    %c0 = arith.constant 0 : index
    %c0_1 = arith.constant 0 : index
    %3 = vector.load %arg2[%c0, %c0_1] : memref<16x128xf32, #tpu.memory_space<vmem>>, vector<16x128xf32>
    %c0_2 = arith.constant 0 : index
    %c0_3 = arith.constant 0 : index
    %4 = vector.load %arg3[%c0_2, %c0_3] : memref<16x128xf32, #tpu.memory_space<vmem>>, vector<16x128xf32>
    %5 = arith.subf %3, %4 : vector<16x128xf32>
    %6 = arith.mulf %5, %5 : vector<16x128xf32>
    %c0_4 = arith.constant 0 : index
    %c0_5 = arith.constant 0 : index
    %7 = vector.load %arg4[%c0_4, %c0_5] : memref<8x128xf32, #tpu.memory_space<vmem>>, vector<8x128xf32>
    %8 = vector.shape_cast %6 : vector<16x128xf32> to vector<2x8x128xf32>
    %cst = arith.constant dense<0.000000e+00> : vector<8x128xf32>
    %9 = vector.multi_reduction <add>, %8, %cst [0] : vector<2x8x128xf32> to vector<8x128xf32>
    %10 = arith.addf %7, %9 : vector<8x128xf32>
    %c0_6 = arith.constant 0 : index
    %c0_7 = arith.constant 0 : index
    %11 = vector.load %arg4[%c0_6, %c0_7] : memref<8x128xf32, #tpu.memory_space<vmem>>, vector<8x128xf32>
    tpu.vector_store %arg4[%c0_6, %c0_7], %10 {strides = array<i32>} : memref<8x128xf32, #tpu.memory_space<vmem>>, vector<8x128xf32>,
    return
  }
  func.func @transform_0(%arg0: i32, %arg1: i32) -> (i32, i32) {
    %c1_i32 = arith.constant 1 : i32
    %0 = arith.muli %arg0, %c1_i32 : i32
    %1 = arith.addi %0, %arg1 : i32
    %c0_i32 = arith.constant 0 : i32
    %c0_i32_0 = arith.constant 0 : i32
    return %1, %c0_i32 : i32, i32
  }
  func.func @transform_1(%arg0: i32, %arg1: i32) -> (i32, i32) {
    %c1_i32 = arith.constant 1 : i32
    %0 = arith.muli %arg0, %c1_i32 : i32
    %1 = arith.addi %0, %arg1 : i32
    %c0_i32 = arith.constant 0 : i32
    %c0_i32_0 = arith.constant 0 : i32
    return %1, %c0_i32 : i32, i32
  }
  func.func @transform_2(%arg0: i32, %arg1: i32) -> (i32, i32) {
    %c0_i32 = arith.constant 0 : i32
    %c0_i32_0 = arith.constant 0 : i32
    return %arg0, %c0_i32 : i32, i32
  }
}

</mosaic_0001>

<llo_original>
// kernel: _mse_loss_pallas.1
$region0: #{_mse_loss_pallas.1}
  #allocation0 [shape = 'u32[]', space=smem, size = 0x4, offset = 0x4, fixed_abs, tag = 'smem constant byte address 0x4 - core index']
  #allocation1 [shape = 'u32[144,128]{1,0:T(1,128)}', space=vmem, size = 0x12000, scoped, tag = 'internal scratch']
  %s0 = inlined_call_operand.vmem [shape: f32[16,128], index: 0, kind: input, shape index: {}]
  %s1 = inlined_call_operand.vmem [shape: f32[16,128], index: 1, kind: input, shape index: {}]
  %s2 = inlined_call_operand.vmem [shape: f32[8,128], index: 2, kind: output, shape index: {}]
  %s3 = sld [smem:[#allocation0]]
  $region22: #{_mse_loss_pallas.1} parent=0
    _
  %s5 = ssub.s32 1, %s3
  %s6 = scalar_select 0, %s5, %s3
  // Predicated region
  $region2: #{_mse_loss_pallas.1} parent=0 // pred_check
    _
  $region3: #{_mse_loss_pallas.1} parent=0 // pred_check_branch
    %8 = sbr.rel (0) target = $region5
  $region4: #{_mse_loss_pallas.1} parent=0 // pred_region
    %s9 = sadd.s32 0, 0
    %s10 = smul.u32 2, %s9
    %p11 = scmp.lt.s32.totalorder %s10, 1
    %s12 = scalar_select %p11, %s10, 1
    %s13 = smul.addr %s12, 8
    %s14 = scalar_lea.vmem %s0, %s13
    %s15 = sadd.s32 0, 0
    %s16 = smul.u32 2, %s15
  $region5: #{_mse_loss_pallas.1} parent=0 // pred_fallthru
    _
  // Predicated region
  $region6: #{_mse_loss_pallas.1} parent=0 // pred_check
    _
  $region7: #{_mse_loss_pallas.1} parent=0 // pred_check_branch
    %18 = sbr.rel (0) target = $region9
  $region8: #{_mse_loss_pallas.1} parent=0 // pred_region
    %s19 = sadd.s32 0, 0
    %s20 = smul.u32 2, %s19
    %p21 = scmp.lt.s32.totalorder %s20, 1
    %s22 = scalar_select %p21, %s20, 1
    %s23 = smul.addr %s22, 8
    %s24 = scalar_lea.vmem %s1, %s23
    %s25 = sadd.s32 0, 0
    %s26 = smul.u32 2, %s25
  $region9: #{_mse_loss_pallas.1} parent=0 // pred_fallthru
    _
  %s27 = sadd.s32 0, 0
  %s28 = smul.u32 2, %s27
  %p29 = scmp.lt.s32.totalorder %s28, 1
  %s30 = scalar_select %p29, %s28, 1
  %s31 = smul.addr %s30, 8
  %s32 = scalar_lea.vmem %s0, %s31
  %s33 = sadd.s32 0, 0
  %s34 = smul.u32 2, %s33
  %p35 = scmp.lt.s32.totalorder %s34, 1
  %s36 = scalar_select %p35, %s34, 1
  %s37 = smul.addr %s36, 8
  %s38 = scalar_lea.vmem %s1, %s37
  %s39 = sadd.s32 0, 0
  %s40 = smul.u32 2, %s39
  %p41 = scmp.lt.s32.totalorder %s40, 1
  %s42 = scalar_select %p41, %s40, 1
  %s43 = smul.addr %s42, 8
  %s44 = scalar_lea.vmem %s0, %s43
  %s45 = sadd.s32 0, 0
  %s46 = smul.u32 2, %s45
  %s47 = sadd.s32 0, 0
  %s48 = smul.u32 2, %s47
  %p49 = scmp.lt.s32.totalorder %s48, 1
  %s50 = scalar_select %p49, %s48, 1
  %s51 = smul.addr %s50, 8
  %s52 = scalar_lea.vmem %s1, %s51
  %s53 = sadd.s32 0, 0
  %s54 = smul.u32 2, %s53
  %p55 = scmp.eq.s32.totalorder 0, 0
  // Predicated region
  $region10: #{_mse_loss_pallas.1} parent=0 // pred_check
    %p56 = pneg %p55
  $region11: #{_mse_loss_pallas.1} parent=0 // pred_check_branch
    %58 = sbr.rel (%p56) target = $region13
  $region12: #{_mse_loss_pallas.1} parent=0 // pred_region
    %59 = vst [vmem:[%s2] sm:$0xff] 0.0
  $region13: #{_mse_loss_pallas.1} parent=0 // pred_fallthru
    _
  %v60 = vld [vmem:[%s44] sm:$0xff]
  %v61 = vld [vmem:[%s44 + $0x8] sm:$0xff]
  %v62 = vld [vmem:[%s52] sm:$0xff]
  %v63 = vld [vmem:[%s52 + $0x8] sm:$0xff]
  %v64 = vsub.f32 %v60, %v62
  %v65 = vsub.f32 %v61, %v63
  %v66 = vmul.f32 %v64, %v64
  %v67 = vmul.f32 %v65, %v65
  %v68 = vld [vmem:[%s2] sm:$0xff]
  %v69 = vadd.f32 %v66, %v67
  %v70 = vadd.f32 %v68, %v69
  %71 = vst [vmem:[%s2] sm:$0xff] %v70
  // Predicated region
  $region14: #{_mse_loss_pallas.1} parent=0 // pred_check
    _
  $region15: #{_mse_loss_pallas.1} parent=0 // pred_check_branch
    %73 = sbr.rel (0) target = $region17
  $region16: #{_mse_loss_pallas.1} parent=0 // pred_region
    _
  $region17: #{_mse_loss_pallas.1} parent=0 // pred_fallthru
    _
  // Predicated region
  $region18: #{_mse_loss_pallas.1} parent=0 // pred_check
    _
  $region19: #{_mse_loss_pallas.1} parent=0 // pred_check_branch
    %75 = sbr.rel (0) target = $region21
  $region20: #{_mse_loss_pallas.1} parent=0 // pred_region
    _
  $region21: #{_mse_loss_pallas.1} parent=0 // pred_fallthru
    _

</llo_original>
